<compile_context>
chip_gen: v7x
topology: tpu7x:2x2x1
jax: 0.10.0
libtpu: 0.0.40
codegen_flags: <defaults>
</compile_context>

<pallas_src>
import jax
import jax.numpy as jnp
from jax.experimental import pallas as pl
from jax.experimental.pallas import tpu as pltpu


def _round_up(n: int, m: int) -> int:
    return (n + m - 1) // m * m


# --------------------------------------------------------------------------
# Kernel
# --------------------------------------------------------------------------
def autoencoder_kernel(x_ref,
                       w1_ref, b1_ref,
                       w2_ref, b2_ref,
                       w3_ref, b3_ref,
                       w4_ref, b4_ref,
                       out_ref):
    # Activations feed the MXU in bf16; accumulation, bias add, ReLU and the
    # sigmoid epilogue are all f32 (v5e's VPU/EUP have no bf16 path).
    x = x_ref[...].astype(jnp.bfloat16)

    # ----- encoder -----
    h = jnp.dot(x, w1_ref[...], preferred_element_type=jnp.float32) + b1_ref[...]
    h = jnp.maximum(h, 0.0)                                           # ReLU
    code = jnp.dot(h.astype(jnp.bfloat16), w2_ref[...],
                   preferred_element_type=jnp.float32) + b2_ref[...]

    # ----- decoder -----
    d = jnp.dot(code.astype(jnp.bfloat16), w3_ref[...],
                preferred_element_type=jnp.float32) + b3_ref[...]
    d = jnp.maximum(d, 0.0)                                           # ReLU
    y = jnp.dot(d.astype(jnp.bfloat16), w4_ref[...],
                preferred_element_type=jnp.float32) + b4_ref[...]

    # sigmoid(y) == 0.5 * tanh(0.5*y) + 0.5 : one EUP transcendental, exact
    # [0, 1] range (no approx reciprocal).
    out_ref[...] = (0.5 * jnp.tanh(0.5 * y) + 0.5).astype(out_ref.dtype)


# --------------------------------------------------------------------------
# Wrapper
# --------------------------------------------------------------------------
def _choose_tile(batch: int, block_b: int) -> int:
    """Batch tile: multiple of 8 (f32 sublane), capped so the grid has >= 2
    steps whenever possible (lets v7x split steps across its 2 TensorCores)."""
    if batch <= 8:
        return batch                       # single block == full array (legal)
    tb = min(block_b, _round_up(batch, 8))
    tb = min(tb, _round_up(pl.cdiv(batch, 2), 8))
    return max(tb, 8)


def autoencoder_forward(x, params, *, block_b: int = 1024):
    """x: (B, input_dim) float32. params: prepared (bf16 weights, f32 biases)."""
    B, input_dim = x.shape
    w1, b1 = params["w1"], params["b1"]
    w2, b2 = params["w2"], params["b2"]
    w3, b3 = params["w3"], params["b3"]
    w4, b4 = params["w4"], params["b4"]
    hidden_dim = w1.shape[1]
    code_pad = w2.shape[1]

    tb = _choose_tile(B, block_b)
    grid = (pl.cdiv(B, tb),)               # ragged last block handled by Pallas

    act_spec = pl.BlockSpec((tb, input_dim), lambda i: (i, 0))
    # Constant index_map -> weights/biases stay resident in VMEM across steps.
    const = lambda a: pl.BlockSpec(a.shape, lambda i: (0, 0))

    flops = 2 * B * (input_dim * hidden_dim + hidden_dim * code_pad
                     + code_pad * hidden_dim + hidden_dim * input_dim)
    weight_bytes = sum(int(a.size) * a.dtype.itemsize
                       for a in (w1, b1, w2, b2, w3, b3, w4, b4))
    cost = pl.CostEstimate(
        flops=flops,
        transcendentals=B * input_dim,
        bytes_accessed=2 * B * input_dim * 4 + weight_bytes,
    )

    return pl.pallas_call(
        autoencoder_kernel,
        out_shape=jax.ShapeDtypeStruct((B, input_dim), x.dtype),
        grid=grid,
        in_specs=[
            act_spec,
            const(w1), const(b1),
            const(w2), const(b2),
            const(w3), const(b3),
            const(w4), const(b4),
        ],
        out_specs=pl.BlockSpec((tb, input_dim), lambda i: (i, 0)),
        compiler_params=pltpu.CompilerParams(
            dimension_semantics=("parallel",),   # v7x: shard batch over 2 TCs
            vmem_limit_bytes=32 << 20,           # fits big tiles, safe on v7x
        ),
        cost_estimate=cost,
    )(x, w1, b1, w2, b2, w3, b3, w4, b4)


# --------------------------------------------------------------------------
# Parameter init / prep
# --------------------------------------------------------------------------
def init_params(key, input_dim=256, hidden_dim=128, code_dim=32):
    """Deterministic synthetic init (Kaiming-uniform-ish, like PyTorch Linear)."""
    ks = jax.random.split(key, 8)

    def linear(kw, kb, fan_in, fan_out):
        bound = 1.0 / jnp.sqrt(fan_in)
        # stored as (in, out) == PyTorch weight.T
        w = jax.random.uniform(kw, (fan_in, fan_out), jnp.float32, -bound, bound)
        b = jax.random.uniform(kb, (1, fan_out), jnp.float32, -bound, bound)
        return w, b

    w1, b1 = linear(ks[0], ks[1], input_dim, hidden_dim)
    w2, b2 = linear(ks[2], ks[3], hidden_dim, code_dim)
    w3, b3 = linear(ks[4], ks[5], code_dim, hidden_dim)
    w4, b4 = linear(ks[6], ks[7], hidden_dim, input_dim)
    return {"w1": w1, "b1": b1, "w2": w2, "b2": b2,
            "w3": w3, "b3": b3, "w4": w4, "b4": b4}


def prepare_params(p):
    """One-time prep: zero-pad the code dim to a lane-dense 128 and cast the
    weight matrices to bf16 (weights stay VMEM-resident; padding is zeros so
    numerics are unchanged).  Biases stay f32."""
    code_dim = p["w2"].shape[1]
    cpad = _round_up(code_dim, 128)
    w2, b2, w3 = p["w2"], p["b2"], p["w3"]
    if cpad != code_dim:
        w2 = jnp.pad(w2, ((0, 0), (0, cpad - code_dim)))
        b2 = jnp.pad(b2, ((0, 0), (0, cpad - code_dim)))
        w3 = jnp.pad(w3, ((0, cpad - code_dim), (0, 0)))
    return {
        "w1": p["w1"].astype(jnp.bfloat16), "b1": p["b1"].astype(jnp.float32),
        "w2": w2.astype(jnp.bfloat16),      "b2": b2.astype(jnp.float32),
        "w3": w3.astype(jnp.bfloat16),      "b3": p["b3"].astype(jnp.float32),
        "w4": p["w4"].astype(jnp.bfloat16), "b4": p["b4"].astype(jnp.float32),
    }


def reference_forward(x, p):
    """Pure-JAX reference using the same (bf16-quantized, padded) params but
    f32 activations.  Tolerance below absorbs in-kernel bf16 activation cast."""
    f32 = lambda a: a.astype(jnp.float32)
    h = jnp.maximum(x @ f32(p["w1"]) + p["b1"], 0.0)
    code = h @ f32(p["w2"]) + p["b2"]
    d = jnp.maximum(code @ f32(p["w3"]) + p["b3"], 0.0)
    return jax.nn.sigmoid(d @ f32(p["w4"]) + p["b4"])


# --------------------------------------------------------------------------
if __name__ == "__main__":
    key = jax.random.PRNGKey(0)
    k_params, k_x = jax.random.split(key)

    input_dim, hidden_dim, code_dim = 256, 128, 32
    batch = 64                            # -> tb=32, grid=(2,)

    raw_params = init_params(k_params, input_dim, hidden_dim, code_dim)
    params = prepare_params(raw_params)   # bf16 weights, code_dim padded to 128
    x = jax.random.normal(k_x, (batch, input_dim), dtype=jnp.float32)

    out = jax.block_until_ready(autoencoder_forward(x, params))
    ref = reference_forward(x, params)
    assert out.shape == (batch, input_dim)
    # Tolerance covers the in-kernel bf16 activation cast feeding the MXU.
    assert jnp.allclose(out, ref, atol=2e-3, rtol=2e-3), (
        float(jnp.max(jnp.abs(out - ref))))

    # Ragged batch (not a multiple of the tile): handled by Pallas directly,
    # no wrapper pad/slice HBM passes.
    x2 = jax.random.normal(jax.random.PRNGKey(1), (50, input_dim), jnp.float32)
    out2 = jax.block_until_ready(autoencoder_forward(x2, params))
    ref2 = reference_forward(x2, params)
    assert out2.shape == (50, input_dim)
    assert jnp.allclose(out2, ref2, atol=2e-3, rtol=2e-3), (
        float(jnp.max(jnp.abs(out2 - ref2))))

    print("KERNEL_OK")
</pallas_src>

<mosaic_0001>
module attributes {stable_mosaic.version = 11 : i64} {
  func.func @autoencoder_kernel(%arg0: i32, %arg1: memref<32x256xf32, #tpu.memory_space<vmem>>, %arg2: memref<256x128xbf16, #tpu.memory_space<vmem>>, %arg3: memref<1x128xf32, #tpu.memory_space<vmem>>, %arg4: memref<128x128xbf16, #tpu.memory_space<vmem>>, %arg5: memref<1x128xf32, #tpu.memory_space<vmem>>, %arg6: memref<128x128xbf16, #tpu.memory_space<vmem>>, %arg7: memref<1x128xf32, #tpu.memory_space<vmem>>, %arg8: memref<128x256xbf16, #tpu.memory_space<vmem>>, %arg9: memref<1x256xf32, #tpu.memory_space<vmem>>, %arg10: memref<32x256xf32, #tpu.memory_space<vmem>>) attributes {dimension_semantics = [#tpu.dimension_semantics<parallel>], iteration_bounds = array<i64: 2>, scalar_prefetch = 0 : i64, scratch_operands = 0 : i64, tpu.core_type = #tpu.core_type<tc>, window_params = [{transform_indices = @transform_0, window_bounds = array<i64: 32, 256>}, {pipeline_mode = #tpu.pipeline_mode<synchronous>, transform_indices = @transform_1, window_bounds = array<i64: 256, 128>}, {pipeline_mode = #tpu.pipeline_mode<synchronous>, transform_indices = @transform_2, window_bounds = array<i64: 1, 128>}, {pipeline_mode = #tpu.pipeline_mode<synchronous>, transform_indices = @transform_3, window_bounds = array<i64: 128, 128>}, {pipeline_mode = #tpu.pipeline_mode<synchronous>, transform_indices = @transform_4, window_bounds = array<i64: 1, 128>}, {pipeline_mode = #tpu.pipeline_mode<synchronous>, transform_indices = @transform_5, window_bounds = array<i64: 128, 128>}, {pipeline_mode = #tpu.pipeline_mode<synchronous>, transform_indices = @transform_6, window_bounds = array<i64: 1, 128>}, {pipeline_mode = #tpu.pipeline_mode<synchronous>, transform_indices = @transform_7, window_bounds = array<i64: 128, 256>}, {pipeline_mode = #tpu.pipeline_mode<synchronous>, transform_indices = @transform_8, window_bounds = array<i64: 1, 256>}, {transform_indices = @transform_9, window_bounds = array<i64: 32, 256>}]} {
    %c0 = arith.constant 0 : index
    %c0_0 = arith.constant 0 : index
    %0 = vector.load %arg1[%c0, %c0_0] : memref<32x256xf32, #tpu.memory_space<vmem>>, vector<32x256xf32>
    %1 = arith.truncf %0 : vector<32x256xf32> to vector<32x256xbf16>
    %c0_1 = arith.constant 0 : index
    %c0_2 = arith.constant 0 : index
    %2 = vector.load %arg2[%c0_1, %c0_2] : memref<256x128xbf16, #tpu.memory_space<vmem>>, vector<256x128xbf16>
    %cst = arith.constant dense<0.000000e+00> : vector<32x128xf32>
    %3 = tpu.matmul %1, %2, %cst {dimension_numbers = #tpu.dot_dimension_numbers<[1], [0], [0], [1], [0, 0, 1, 1], [], []>} : vector<32x256xbf16>, vector<256x128xbf16>, vector<32x128xf32> -> vector<32x128xf32>
    %c0_3 = arith.constant 0 : index
    %c0_4 = arith.constant 0 : index
    %4 = vector.load %arg3[%c0_3, %c0_4] : memref<1x128xf32, #tpu.memory_space<vmem>>, vector<1x128xf32>
    %5 = vector.broadcast %4 : vector<1x128xf32> to vector<32x128xf32>
    %6 = arith.addf %3, %5 : vector<32x128xf32>
    %cst_5 = arith.constant 0.000000e+00 : f32
    %7 = vector.broadcast %cst_5 : f32 to vector<32x128xf32>
    %8 = arith.maximumf %6, %7 : vector<32x128xf32>
    %9 = arith.truncf %8 : vector<32x128xf32> to vector<32x128xbf16>
    %c0_6 = arith.constant 0 : index
    %c0_7 = arith.constant 0 : index
    %10 = vector.load %arg4[%c0_6, %c0_7] : memref<128x128xbf16, #tpu.memory_space<vmem>>, vector<128x128xbf16>
    %cst_8 = arith.constant dense<0.000000e+00> : vector<32x128xf32>
    %11 = tpu.matmul %9, %10, %cst_8 {dimension_numbers = #tpu.dot_dimension_numbers<[1], [0], [0], [1], [0, 0, 1, 1], [], []>} : vector<32x128xbf16>, vector<128x128xbf16>, vector<32x128xf32> -> vector<32x128xf32>
    %c0_9 = arith.constant 0 : index
    %c0_10 = arith.constant 0 : index
    %12 = vector.load %arg5[%c0_9, %c0_10] : memref<1x128xf32, #tpu.memory_space<vmem>>, vector<1x128xf32>
    %13 = vector.broadcast %12 : vector<1x128xf32> to vector<32x128xf32>
    %14 = arith.addf %11, %13 : vector<32x128xf32>
    %15 = arith.truncf %14 : vector<32x128xf32> to vector<32x128xbf16>
    %c0_11 = arith.constant 0 : index
    %c0_12 = arith.constant 0 : index
    %16 = vector.load %arg6[%c0_11, %c0_12] : memref<128x128xbf16, #tpu.memory_space<vmem>>, vector<128x128xbf16>
    %cst_13 = arith.constant dense<0.000000e+00> : vector<32x128xf32>
    %17 = tpu.matmul %15, %16, %cst_13 {dimension_numbers = #tpu.dot_dimension_numbers<[1], [0], [0], [1], [0, 0, 1, 1], [], []>} : vector<32x128xbf16>, vector<128x128xbf16>, vector<32x128xf32> -> vector<32x128xf32>
    %c0_14 = arith.constant 0 : index
    %c0_15 = arith.constant 0 : index
    %18 = vector.load %arg7[%c0_14, %c0_15] : memref<1x128xf32, #tpu.memory_space<vmem>>, vector<1x128xf32>
    %19 = vector.broadcast %18 : vector<1x128xf32> to vector<32x128xf32>
    %20 = arith.addf %17, %19 : vector<32x128xf32>
    %cst_16 = arith.constant 0.000000e+00 : f32
    %21 = vector.broadcast %cst_16 : f32 to vector<32x128xf32>
    %22 = arith.maximumf %20, %21 : vector<32x128xf32>
    %23 = arith.truncf %22 : vector<32x128xf32> to vector<32x128xbf16>
    %c0_17 = arith.constant 0 : index
    %c0_18 = arith.constant 0 : index
    %24 = vector.load %arg8[%c0_17, %c0_18] : memref<128x256xbf16, #tpu.memory_space<vmem>>, vector<128x256xbf16>
    %cst_19 = arith.constant dense<0.000000e+00> : vector<32x256xf32>
    %25 = tpu.matmul %23, %24, %cst_19 {dimension_numbers = #tpu.dot_dimension_numbers<[1], [0], [0], [1], [0, 0, 1, 1], [], []>} : vector<32x128xbf16>, vector<128x256xbf16>, vector<32x256xf32> -> vector<32x256xf32>
    %c0_20 = arith.constant 0 : index
    %c0_21 = arith.constant 0 : index
    %26 = vector.load %arg9[%c0_20, %c0_21] : memref<1x256xf32, #tpu.memory_space<vmem>>, vector<1x256xf32>
    %27 = vector.broadcast %26 : vector<1x256xf32> to vector<32x256xf32>
    %28 = arith.addf %25, %27 : vector<32x256xf32>
    %cst_22 = arith.constant 5.000000e-01 : f32
    %29 = vector.broadcast %cst_22 : f32 to vector<32x256xf32>
    %30 = arith.mulf %29, %28 : vector<32x256xf32>
    %31 = math.tanh %30 : vector<32x256xf32>
    %cst_23 = arith.constant 5.000000e-01 : f32
    %32 = vector.broadcast %cst_23 : f32 to vector<32x256xf32>
    %33 = arith.mulf %32, %31 : vector<32x256xf32>
    %cst_24 = arith.constant 5.000000e-01 : f32
    %34 = vector.broadcast %cst_24 : f32 to vector<32x256xf32>
    %35 = arith.addf %33, %34 : vector<32x256xf32>
    %c0_25 = arith.constant 0 : index
    %c0_26 = arith.constant 0 : index
    %36 = vector.load %arg10[%c0_25, %c0_26] : memref<32x256xf32, #tpu.memory_space<vmem>>, vector<32x256xf32>
    tpu.vector_store %arg10[%c0_25, %c0_26], %35 {strides = array<i32>} : memref<32x256xf32, #tpu.memory_space<vmem>>, vector<32x256xf32>,
    return
  }
  func.func @transform_0(%arg0: i32) -> (i32, i32) {
    %c0_i32 = arith.constant 0 : i32
    %c0_i32_0 = arith.constant 0 : i32
    return %arg0, %c0_i32 : i32, i32
  }
  func.func @transform_1(%arg0: i32) -> (i32, i32) {
    %c0_i32 = arith.constant 0 : i32
    %c0_i32_0 = arith.constant 0 : i32
    %c0_i32_1 = arith.constant 0 : i32
    return %c0_i32, %c0_i32_0 : i32, i32
  }
  func.func @transform_2(%arg0: i32) -> (i32, i32) {
    %c0_i32 = arith.constant 0 : i32
    %c0_i32_0 = arith.constant 0 : i32
    %c0_i32_1 = arith.constant 0 : i32
    return %c0_i32, %c0_i32_0 : i32, i32
  }
  func.func @transform_3(%arg0: i32) -> (i32, i32) {
    %c0_i32 = arith.constant 0 : i32
    %c0_i32_0 = arith.constant 0 : i32
    %c0_i32_1 = arith.constant 0 : i32
    return %c0_i32, %c0_i32_0 : i32, i32
  }
  func.func @transform_4(%arg0: i32) -> (i32, i32) {
    %c0_i32 = arith.constant 0 : i32
    %c0_i32_0 = arith.constant 0 : i32
    %c0_i32_1 = arith.constant 0 : i32
    return %c0_i32, %c0_i32_0 : i32, i32
  }
  func.func @transform_5(%arg0: i32) -> (i32, i32) {
    %c0_i32 = arith.constant 0 : i32
    %c0_i32_0 = arith.constant 0 : i32
    %c0_i32_1 = arith.constant 0 : i32
    return %c0_i32, %c0_i32_0 : i32, i32
  }
  func.func @transform_6(%arg0: i32) -> (i32, i32) {
    %c0_i32 = arith.constant 0 : i32
    %c0_i32_0 = arith.constant 0 : i32
    %c0_i32_1 = arith.constant 0 : i32
    return %c0_i32, %c0_i32_0 : i32, i32
  }
  func.func @transform_7(%arg0: i32) -> (i32, i32) {
    %c0_i32 = arith.constant 0 : i32
    %c0_i32_0 = arith.constant 0 : i32
    %c0_i32_1 = arith.constant 0 : i32
    return %c0_i32, %c0_i32_0 : i32, i32
  }
  func.func @transform_8(%arg0: i32) -> (i32, i32) {
    %c0_i32 = arith.constant 0 : i32
    %c0_i32_0 = arith.constant 0 : i32
    %c0_i32_1 = arith.constant 0 : i32
    return %c0_i32, %c0_i32_0 : i32, i32
  }
  func.func @transform_9(%arg0: i32) -> (i32, i32) {
    %c0_i32 = arith.constant 0 : i32
    %c0_i32_0 = arith.constant 0 : i32
    return %arg0, %c0_i32 : i32, i32
  }
}

</mosaic_0001>

<llo_original>
// kernel: tpu_custom_call.1
$region0: #{tpu_custom_call.1}
  #allocation0 [shape = 'u32[]', space=smem, size = 0x4, offset = 0x4, fixed_abs, tag = 'smem constant byte address 0x4 - core index']
  #allocation1 [shape = 'u32[144,128]{1,0:T(1,128)}', space=vmem, size = 0x12000, scoped, tag = 'internal scratch']
  %s0 = inlined_call_operand.hbm [shape: f32[64,256], index: 0, kind: input, shape index: {}]
  %s1 = inlined_call_operand.hbm [shape: bf16[256,128], index: 1, kind: input, shape index: {}]
  %s2 = inlined_call_operand.vmem [shape: f32[1,128], index: 2, kind: input, shape index: {}]
  %s3 = inlined_call_operand.hbm [shape: bf16[128,128], index: 3, kind: input, shape index: {}]
  %s4 = inlined_call_operand.vmem [shape: f32[1,128], index: 4, kind: input, shape index: {}]
  %s5 = inlined_call_operand.hbm [shape: bf16[128,128], index: 5, kind: input, shape index: {}]
  %s6 = inlined_call_operand.vmem [shape: f32[1,128], index: 6, kind: input, shape index: {}]
  %s7 = inlined_call_operand.hbm [shape: bf16[128,256], index: 7, kind: input, shape index: {}]
  %s8 = inlined_call_operand.vmem [shape: f32[1,256], index: 8, kind: input, shape index: {}]
  %s9 = inlined_call_operand.hbm [shape: f32[64,256], index: 9, kind: output, shape index: {}]
  %s10 = sld [smem:[#allocation0]]
  $region89: #{tpu_custom_call.1} parent=0
    _
  %s12 = ssub.s32 1, %s10
  %s13 = scalar_select 0, %s12, %s10
  $region1: #{tpu_custom_call.1} parent=0
    #allocation2 [shape = 'u8[65536]{0}', space=vmem, size = 0x10000, scoped, tag = 'input window, operand 0']
    #allocation3 [shape = 's32[2]{0}', space=sflag, size = 0x8, scoped, tag = 'scoped memory for tpu_custom_call.1']
    #allocation4 [shape = 's32[2]{0}', space=sflag, size = 0x8, scoped, tag = 'scoped memory for tpu_custom_call.1']
    #allocation5 [shape = 'u8[65536]{0}', space=vmem, size = 0x10000, scoped, tag = 'input window, operand 1, single buffered']
    #allocation6 [shape = 's32[1]{0}', space=sflag, size = 0x4, scoped, tag = 'scoped memory for tpu_custom_call.1']
    #allocation7 [shape = 'u8[32768]{0}', space=vmem, size = 0x8000, scoped, tag = 'input window, operand 3, single buffered']
    #allocation8 [shape = 'u8[32768]{0}', space=vmem, size = 0x8000, scoped, tag = 'input window, operand 5, single buffered']
    #allocation9 [shape = 's32[1]{0}', space=sflag, size = 0x4, scoped, tag = 'scoped memory for tpu_custom_call.1']
    #allocation10 [shape = 'u8[65536]{0}', space=vmem, size = 0x10000, scoped, tag = 'input window, operand 7, single buffered']
    #allocation11 [shape = 'u8[65536]{0}', space=vmem, size = 0x10000, scoped, tag = 'output window, operand 0']
    %14 = vsyncpa [#allocation3], 0
    %s15 = scalar_lea.sflag [#allocation3], 1
    %16 = vsyncpa %s15, 0
    %17 = vsyncpa [#allocation6], 0
    %18 = vsyncpa [#allocation9], 0
    %19 = vsyncpa [#allocation4], 0
    %s20 = scalar_lea.sflag [#allocation4], 1
    %21 = vsyncpa %s20, 0
    loop: start=0, step=1, limit=4
    $region2: #{tpu_custom_call.1} parent=1 // loop_pre_header
      _
    $region3: #{tpu_custom_call.1} parent=1 // loop_header
      %s23 = sphi 0, %s27
      %p24 = scmp.ge.s32.totalorder %s23, 4
      %s33 = sphi 0, %s35
      %s36 = sphi 0, %s33
      %s37 = sphi 0, %s36
      %s53 = sphi 0, %s37
      %s57 = sphi 0, %s57
      %s59 = sphi 0, %s57
      %s60 = sphi 0, %s59
      %s74 = sphi 0, %s60
      %s78 = sphi 0, %s78
      %s80 = sphi 0, %s78
      %s81 = sphi 0, %s80
      %s95 = sphi 0, %s81
      %s99 = sphi 0, %s99
      %s101 = sphi 0, %s99
      %s102 = sphi 0, %s101
      %s116 = sphi 0, %s102
      %s120 = sphi 0, %s120
      %s122 = sphi 0, %s120
      %s123 = sphi 0, %s122
      %s137 = sphi 0, %s123
      %s141 = sphi 0, %s141
      %s143 = sphi 0, %s141
      %s144 = sphi 0, %s143
      %s158 = sphi 0, %s144
      %s162 = sphi 0, %s162
      %s164 = sphi 0, %s162
      %s165 = sphi 0, %s164
      %s179 = sphi 0, %s165
      %s183 = sphi 0, %s183
      %s185 = sphi 0, %s183
      %s186 = sphi 0, %s185
      %s200 = sphi 0, %s186
      %s204 = sphi 0, %s204
      %s206 = sphi 0, %s204
      %s207 = sphi 0, %s206
      %s221 = sphi 0, %s207
      %s227 = sphi 0, %s229
      %s230 = sphi 0, %s227
      %s231 = sphi 0, %s230
      %s247 = sphi 0, %s231
    $region4: #{tpu_custom_call.1} parent=1 // loop_header_branch
      %26 = sbr.rel (%p24) target = $region8
    $region5: #{tpu_custom_call.1} parent=1 // loop_body
      %s28 = ssub.s32 %s23, 1
      %s29 = ssub.s32 %s23, 2
      %s30 = sadd.s32 %s23, 1
      %s31 = ssub.s32 %s23, %s30
      %p32 = scmp.eq.s32.totalorder %s31, 0
      %s34 = sadd.s32 %s33, 1
      %s35 = scalar_select %p32, %s33, %s34
      %p38 = pneg %p32
      %p39 = scmp.eq.s32.totalorder %s23, 1
      %p40 = por %p38, %p39
      %p41 = scmp.ne.s32.totalorder %s33, %s36
      %p42 = scmp.eq.s32.totalorder %s23, 0
      %p43 = por %p41, %p42
      %p44 = scmp.ne.s32.totalorder %s33, %s36
      %p45 = scmp.eq.s32.totalorder %s28, 1
      %p46 = por %p44, %p45
      %p47 = scmp.ne.s32.totalorder %s36, %s37
      %p48 = scmp.eq.s32.totalorder %s28, 0
      %p49 = por %p47, %p48
      %p50 = scmp.ne.s32.totalorder %s36, %s37
      %p51 = scmp.eq.s32.totalorder %s29, 1
      %p52 = por %p50, %p51
      %p54 = scmp.ne.s32.totalorder %s37, %s53
      %p55 = scmp.eq.s32.totalorder %s29, 0
      %p56 = por %p54, %p55
      %s58 = sadd.s32 %s57, 1
      %p61 = scmp.eq.s32.totalorder %s23, 1
      %p62 = scmp.ne.s32.totalorder %s57, %s59
      %p63 = scmp.eq.s32.totalorder %s23, 0
      %p64 = por %p62, %p63
      %p65 = scmp.ne.s32.totalorder %s57, %s59
      %p66 = scmp.eq.s32.totalorder %s28, 1
      %p67 = por %p65, %p66
      %p68 = scmp.ne.s32.totalorder %s59, %s60
      %p69 = scmp.eq.s32.totalorder %s28, 0
      %p70 = por %p68, %p69
      %p71 = scmp.ne.s32.totalorder %s59, %s60
      %p72 = scmp.eq.s32.totalorder %s29, 1
      %p73 = por %p71, %p72
      %p75 = scmp.ne.s32.totalorder %s60, %s74
      %p76 = scmp.eq.s32.totalorder %s29, 0
      %p77 = por %p75, %p76
      %s79 = sadd.s32 %s78, 1
      %p82 = scmp.eq.s32.totalorder %s23, 1
      %p83 = scmp.ne.s32.totalorder %s78, %s80
      %p84 = scmp.eq.s32.totalorder %s23, 0
      %p85 = por %p83, %p84
      %p86 = scmp.ne.s32.totalorder %s78, %s80
      %p87 = scmp.eq.s32.totalorder %s28, 1
      %p88 = por %p86, %p87
      %p89 = scmp.ne.s32.totalorder %s80, %s81
      %p90 = scmp.eq.s32.totalorder %s28, 0
      %p91 = por %p89, %p90
      %p92 = scmp.ne.s32.totalorder %s80, %s81
      %p93 = scmp.eq.s32.totalorder %s29, 1
      %p94 = por %p92, %p93
      %p96 = scmp.ne.s32.totalorder %s81, %s95
      %p97 = scmp.eq.s32.totalorder %s29, 0
      %p98 = por %p96, %p97
      %s100 = sadd.s32 %s99, 1
      %p103 = scmp.eq.s32.totalorder %s23, 1
      %p104 = scmp.ne.s32.totalorder %s99, %s101
      %p105 = scmp.eq.s32.totalorder %s23, 0
      %p106 = por %p104, %p105
      %p107 = scmp.ne.s32.totalorder %s99, %s101
      %p108 = scmp.eq.s32.totalorder %s28, 1
      %p109 = por %p107, %p108
      %p110 = scmp.ne.s32.totalorder %s101, %s102
      %p111 = scmp.eq.s32.totalorder %s28, 0
      %p112 = por %p110, %p111
      %p113 = scmp.ne.s32.totalorder %s101, %s102
      %p114 = scmp.eq.s32.totalorder %s29, 1
      %p115 = por %p113, %p114
      %p117 = scmp.ne.s32.totalorder %s102, %s116
      %p118 = scmp.eq.s32.totalorder %s29, 0
      %p119 = por %p117, %p118
      %s121 = sadd.s32 %s120, 1
      %p124 = scmp.eq.s32.totalorder %s23, 1
      %p125 = scmp.ne.s32.totalorder %s120, %s122
      %p126 = scmp.eq.s32.totalorder %s23, 0
      %p127 = por %p125, %p126
      %p128 = scmp.ne.s32.totalorder %s120, %s122
      %p129 = scmp.eq.s32.totalorder %s28, 1
      %p130 = por %p128, %p129
      %p131 = scmp.ne.s32.totalorder %s122, %s123
      %p132 = scmp.eq.s32.totalorder %s28, 0
      %p133 = por %p131, %p132
      %p134 = scmp.ne.s32.totalorder %s122, %s123
      %p135 = scmp.eq.s32.totalorder %s29, 1
      %p136 = por %p134, %p135
      %p138 = scmp.ne.s32.totalorder %s123, %s137
      %p139 = scmp.eq.s32.totalorder %s29, 0
      %p140 = por %p138, %p139
      %s142 = sadd.s32 %s141, 1
      %p145 = scmp.eq.s32.totalorder %s23, 1
      %p146 = scmp.ne.s32.totalorder %s141, %s143
      %p147 = scmp.eq.s32.totalorder %s23, 0
      %p148 = por %p146, %p147
      %p149 = scmp.ne.s32.totalorder %s141, %s143
      %p150 = scmp.eq.s32.totalorder %s28, 1
      %p151 = por %p149, %p150
      %p152 = scmp.ne.s32.totalorder %s143, %s144
      %p153 = scmp.eq.s32.totalorder %s28, 0
      %p154 = por %p152, %p153
      %p155 = scmp.ne.s32.totalorder %s143, %s144
      %p156 = scmp.eq.s32.totalorder %s29, 1
      %p157 = por %p155, %p156
      %p159 = scmp.ne.s32.totalorder %s144, %s158
      %p160 = scmp.eq.s32.totalorder %s29, 0
      %p161 = por %p159, %p160
      %s163 = sadd.s32 %s162, 1
      %p166 = scmp.eq.s32.totalorder %s23, 1
      %p167 = scmp.ne.s32.totalorder %s162, %s164
      %p168 = scmp.eq.s32.totalorder %s23, 0
      %p169 = por %p167, %p168
      %p170 = scmp.ne.s32.totalorder %s162, %s164
      %p171 = scmp.eq.s32.totalorder %s28, 1
      %p172 = por %p170, %p171
      %p173 = scmp.ne.s32.totalorder %s164, %s165
      %p174 = scmp.eq.s32.totalorder %s28, 0
      %p175 = por %p173, %p174
      %p176 = scmp.ne.s32.totalorder %s164, %s165
      %p177 = scmp.eq.s32.totalorder %s29, 1
      %p178 = por %p176, %p177
      %p180 = scmp.ne.s32.totalorder %s165, %s179
      %p181 = scmp.eq.s32.totalorder %s29, 0
      %p182 = por %p180, %p181
      %s184 = sadd.s32 %s183, 1
      %p187 = scmp.eq.s32.totalorder %s23, 1
      %p188 = scmp.ne.s32.totalorder %s183, %s185
      %p189 = scmp.eq.s32.totalorder %s23, 0
      %p190 = por %p188, %p189
      %p191 = scmp.ne.s32.totalorder %s183, %s185
      %p192 = scmp.eq.s32.totalorder %s28, 1
      %p193 = por %p191, %p192
      %p194 = scmp.ne.s32.totalorder %s185, %s186
      %p195 = scmp.eq.s32.totalorder %s28, 0
      %p196 = por %p194, %p195
      %p197 = scmp.ne.s32.totalorder %s185, %s186
      %p198 = scmp.eq.s32.totalorder %s29, 1
      %p199 = por %p197, %p198
      %p201 = scmp.ne.s32.totalorder %s186, %s200
      %p202 = scmp.eq.s32.totalorder %s29, 0
      %p203 = por %p201, %p202
      %s205 = sadd.s32 %s204, 1
      %p208 = scmp.eq.s32.totalorder %s23, 1
      %p209 = scmp.ne.s32.totalorder %s204, %s206
      %p210 = scmp.eq.s32.totalorder %s23, 0
      %p211 = por %p209, %p210
      %p212 = scmp.ne.s32.totalorder %s204, %s206
      %p213 = scmp.eq.s32.totalorder %s28, 1
      %p214 = por %p212, %p213
      %p215 = scmp.ne.s32.totalorder %s206, %s207
      %p216 = scmp.eq.s32.totalorder %s28, 0
      %p217 = por %p215, %p216
      %p218 = scmp.ne.s32.totalorder %s206, %s207
      %p219 = scmp.eq.s32.totalorder %s29, 1
      %p220 = por %p218, %p219
      %p222 = scmp.ne.s32.totalorder %s207, %s221
      %p223 = scmp.eq.s32.totalorder %s29, 0
      %p224 = por %p222, %p223
      %s225 = ssub.s32 %s23, %s30
      %p226 = scmp.eq.s32.totalorder %s225, 0
      %s228 = sadd.s32 %s227, 1
      %s229 = scalar_select %p226, %s227, %s228
      %p232 = pneg %p226
      %p233 = scmp.eq.s32.totalorder %s23, 1
      %p234 = por %p232, %p233
      %p235 = scmp.ne.s32.totalorder %s227, %s230
      %p236 = scmp.eq.s32.totalorder %s23, 0
      %p237 = por %p235, %p236
      %p238 = scmp.ne.s32.totalorder %s227, %s230
      %p239 = scmp.eq.s32.totalorder %s28, 1
      %p240 = por %p238, %p239
      %p241 = scmp.ne.s32.totalorder %s230, %s231
      %p242 = scmp.eq.s32.totalorder %s28, 0
      %p243 = por %p241, %p242
      %p244 = scmp.ne.s32.totalorder %s230, %s231
      %p245 = scmp.eq.s32.totalorder %s29, 1
      %p246 = por %p244, %p245
      %p248 = scmp.ne.s32.totalorder %s231, %s247
      %p249 = scmp.eq.s32.totalorder %s29, 0
      %p250 = por %p248, %p249
      %p251 = scmp.le.s32.totalorder 1, %s23
      %p252 = scmp.lt.s32.totalorder %s23, 3
      %p253 = pnand %p251, %p252
      %p254 = pneg %p253
      // Predicated region
      $region9: #{tpu_custom_call.1} parent=5 // pred_check
        _
      $region10: #{tpu_custom_call.1} parent=5 // pred_check_branch
        %256 = sbr.rel (%p253) target = $region12
      $region11: #{tpu_custom_call.1} parent=5 // pred_region
        %s257 = ssub.s32 %s23, 1
        // Predicated region
        $region13: #{tpu_custom_call.1} parent=11 // pred_check
          %p258 = pneg %p70
        $region14: #{tpu_custom_call.1} parent=11 // pred_check_branch
          %260 = sbr.rel (%p258) target = $region16
        $region15: #{tpu_custom_call.1} parent=11 // pred_region
          %s262 = ssub.s32 2048, 2048
          %263 = vsyncadd [#allocation6], %s262
          %s264 = sshll.u32 [#allocation5], 4
          %s265 = int_to_ptr.vmem [resolvable:$true] %s264
          %270 = dma.hbm_to_vmem [thread:$0]  %s1, 2048, %s265, [#allocation6], 64, 64, 4
        $region16: #{tpu_custom_call.1} parent=11 // pred_fallthru
          _
        // Predicated region
        $region17: #{tpu_custom_call.1} parent=11 // pred_check
          %p271 = pneg %p91
        $region18: #{tpu_custom_call.1} parent=11 // pred_check_branch
          %273 = sbr.rel (%p271) target = $region20
        $region19: #{tpu_custom_call.1} parent=11 // pred_region
          _
        $region20: #{tpu_custom_call.1} parent=11 // pred_fallthru
          _
        // Predicated region
        $region21: #{tpu_custom_call.1} parent=11 // pred_check
          %p274 = pneg %p112
        $region22: #{tpu_custom_call.1} parent=11 // pred_check_branch
          %276 = sbr.rel (%p274) target = $region24
        $region23: #{tpu_custom_call.1} parent=11 // pred_region
          %s278 = ssub.s32 1024, 1024
          %279 = vsyncadd [#allocation6], %s278
          %s280 = sshll.u32 [#allocation7], 4
          %s281 = int_to_ptr.vmem [resolvable:$true] %s280
          %286 = dma.hbm_to_vmem [thread:$0]  %s3, 1024, %s281, [#allocation6], 64, 64, 4
        $region24: #{tpu_custom_call.1} parent=11 // pred_fallthru
          _
        // Predicated region
        $region25: #{tpu_custom_call.1} parent=11 // pred_check
          %p287 = pneg %p133
        $region26: #{tpu_custom_call.1} parent=11 // pred_check_branch
          %289 = sbr.rel (%p287) target = $region28
        $region27: #{tpu_custom_call.1} parent=11 // pred_region
          _
        $region28: #{tpu_custom_call.1} parent=11 // pred_fallthru
          _
        // Predicated region
        $region29: #{tpu_custom_call.1} parent=11 // pred_check
          %p290 = pneg %p154
        $region30: #{tpu_custom_call.1} parent=11 // pred_check_branch
          %292 = sbr.rel (%p290) target = $region32
        $region31: #{tpu_custom_call.1} parent=11 // pred_region
          %s294 = ssub.s32 1024, 1024
          %295 = vsyncadd [#allocation9], %s294
          %s296 = sshll.u32 [#allocation8], 4
          %s297 = int_to_ptr.vmem [resolvable:$true] %s296
          %302 = dma.hbm_to_vmem [thread:$0]  %s5, 1024, %s297, [#allocation9], 64, 64, 4
        $region32: #{tpu_custom_call.1} parent=11 // pred_fallthru
          _
        // Predicated region
        $region33: #{tpu_custom_call.1} parent=11 // pred_check
          %p303 = pneg %p175
        $region34: #{tpu_custom_call.1} parent=11 // pred_check_branch
          %305 = sbr.rel (%p303) target = $region36
        $region35: #{tpu_custom_call.1} parent=11 // pred_region
          _
        $region36: #{tpu_custom_call.1} parent=11 // pred_fallthru
          _
        // Predicated region
        $region37: #{tpu_custom_call.1} parent=11 // pred_check
          %p306 = pneg %p196
        $region38: #{tpu_custom_call.1} parent=11 // pred_check_branch
          %308 = sbr.rel (%p306) target = $region40
        $region39: #{tpu_custom_call.1} parent=11 // pred_region
          %s310 = ssub.s32 2048, 2048
          %311 = vsyncadd [#allocation9], %s310
          %s312 = sshll.u32 [#allocation10], 4
          %s313 = int_to_ptr.vmem [resolvable:$true] %s312
          %318 = dma.hbm_to_vmem [thread:$0]  %s7, 2048, %s313, [#allocation9], 128, 128, 8
        $region40: #{tpu_custom_call.1} parent=11 // pred_fallthru
          _
        // Predicated region
        $region41: #{tpu_custom_call.1} parent=11 // pred_check
          %p319 = pneg %p217
        $region42: #{tpu_custom_call.1} parent=11 // pred_check_branch
          %321 = sbr.rel (%p319) target = $region44
        $region43: #{tpu_custom_call.1} parent=11 // pred_region
          _
        $region44: #{tpu_custom_call.1} parent=11 // pred_fallthru
          _
      $region12: #{tpu_custom_call.1} parent=5 // pred_fallthru
        _
      %p322 = scmp.lt.s32.totalorder %s23, 2
      // Predicated region
      $region45: #{tpu_custom_call.1} parent=5 // pred_check
        %p323 = pneg %p322
      $region46: #{tpu_custom_call.1} parent=5 // pred_check_branch
        %325 = sbr.rel (%p323) target = $region48
      $region47: #{tpu_custom_call.1} parent=5 // pred_region
        // Predicated region
        $region49: #{tpu_custom_call.1} parent=47 // pred_check
          %p326 = pneg %p43
        $region50: #{tpu_custom_call.1} parent=47 // pred_check_branch
          %328 = sbr.rel (%p326) target = $region52
        $region51: #{tpu_custom_call.1} parent=47 // pred_region
          %s329 = sand.u32 %s33, 1
          %s330 = scalar_lea.sflag [#allocation3], %s329
          %s331 = sand.u32 %s33, 1
          %s332 = smul.addr %s331, 64
          %s333 = scalar_lea.vmem [#allocation2], %s332
          %s334 = smul.u32 4, %s23
          %s336 = ssub.s32 1024, 1024
          %337 = vsyncadd %s330, %s336
          %s338 = smul.addr %s334, 2
          %s339 = smul.addr %s338, 128
          %s340 = scalar_lea.hbm %s0, %s339
          %s341 = sshll.u32 %s333, 4
          %s342 = int_to_ptr.vmem [resolvable:$true] %s341
          %347 = dma.hbm_to_vmem [thread:$0]  %s340, 1024, %s342, %s330, 256, 256, 16
        $region52: #{tpu_custom_call.1} parent=47 // pred_fallthru
          _
      $region48: #{tpu_custom_call.1} parent=5 // pred_fallthru
        _
      %p348 = scmp.le.s32.totalorder 1, %s23
      %p349 = scmp.lt.s32.totalorder %s23, 3
      %p350 = pnand %p348, %p349
      %p351 = pneg %p350
      // Predicated region
      $region53: #{tpu_custom_call.1} parent=5 // pred_check
        _
      $region54: #{tpu_custom_call.1} parent=5 // pred_check_branch
        %353 = sbr.rel (%p350) target = $region56
      $region55: #{tpu_custom_call.1} parent=5 // pred_region
        %s354 = ssub.s32 %s23, 1
        %s355 = sand.u32 %s36, 1
        %s356 = scalar_lea.sflag [#allocation3], %s355
        %s357 = sand.u32 %s36, 1
        %s358 = smul.addr %s357, 64
        %s359 = scalar_lea.vmem [#allocation2], %s358
        // Predicated region
        $region57: #{tpu_custom_call.1} parent=55 // pred_check
          %p360 = pneg %p49
        $region58: #{tpu_custom_call.1} parent=55 // pred_check_branch
          %362 = sbr.rel (%p360) target = $region60
        $region59: #{tpu_custom_call.1} parent=55 // pred_region
          %363 = dma.done %s356, 1024
        $region60: #{tpu_custom_call.1} parent=55 // pred_fallthru
          _
        // Predicated region
        $region61: #{tpu_custom_call.1} parent=55 // pred_check
          %p364 = pneg %p70
        $region62: #{tpu_custom_call.1} parent=55 // pred_check_branch
          %366 = sbr.rel (%p364) target = $region64
        $region63: #{tpu_custom_call.1} parent=55 // pred_region
          %367 = dma.done [#allocation6], 2048
        $region64: #{tpu_custom_call.1} parent=55 // pred_fallthru
          _
        // Predicated region
        $region65: #{tpu_custom_call.1} parent=55 // pred_check
          %p368 = pneg %p112
        $region66: #{tpu_custom_call.1} parent=55 // pred_check_branch
          %370 = sbr.rel (%p368) target = $region68
        $region67: #{tpu_custom_call.1} parent=55 // pred_region
          %371 = dma.done [#allocation6], 1024
        $region68: #{tpu_custom_call.1} parent=55 // pred_fallthru
          _
        // Predicated region
        $region69: #{tpu_custom_call.1} parent=55 // pred_check
          %p372 = pneg %p154
        $region70: #{tpu_custom_call.1} parent=55 // pred_check_branch
          %374 = sbr.rel (%p372) target = $region72
        $region71: #{tpu_custom_call.1} parent=55 // pred_region
          %375 = dma.done [#allocation9], 1024
        $region72: #{tpu_custom_call.1} parent=55 // pred_fallthru
          _
        // Predicated region
        $region73: #{tpu_custom_call.1} parent=55 // pred_check
          %p376 = pneg %p196
        $region74: #{tpu_custom_call.1} parent=55 // pred_check_branch
          %378 = sbr.rel (%p376) target = $region76
        $region75: #{tpu_custom_call.1} parent=55 // pred_region
          %379 = dma.done [#allocation9], 2048
        $region76: #{tpu_custom_call.1} parent=55 // pred_fallthru
          _
        %s380 = sand.u32 %s36, 1
        %s381 = scalar_lea.sflag [#allocation3], %s380
        %s382 = sand.u32 %s36, 1
        %s383 = smul.addr %s382, 64
        %s384 = scalar_lea.vmem [#allocation2], %s383
        %p385 = pneg %p49
        %p386 = pneg %p46
        %p387 = pneg %p70
        %p388 = pneg %p67
        %p389 = pneg %p91
        %p390 = pneg %p88
        %p391 = pneg %p112
        %p392 = pneg %p109
        %p393 = pneg %p133
        %p394 = pneg %p130
        %p395 = pneg %p154
        %p396 = pneg %p151
        %p397 = pneg %p175
        %p398 = pneg %p172
        %p399 = pneg %p196
        %p400 = pneg %p193
        %p401 = pneg %p217
        %p402 = pneg %p214
        %p403 = pneg %p243
        %p404 = pneg %p240
        %s405 = sand.u32 %s230, 1
        %s406 = scalar_lea.sflag [#allocation4], %s405
        %s407 = sand.u32 %s230, 1
        %s408 = smul.addr %s407, 64
        %s409 = scalar_lea.vmem [#allocation11], %s408
        %s410 = smul.u32 4, %s28
        %s411 = smul.u32 4, %s28
        %v413 = vld [vmem:[%s359] sm:$0xff]
        %v414 = vld [vmem:[%s359 + $0x8] sm:$0xff]
        %v415 = vld [vmem:[%s359 + $0x10] sm:$0xff]
        %v416 = vld [vmem:[%s359 + $0x18] sm:$0xff]
        %v417 = vld [vmem:[%s359 + $0x20] sm:$0xff]
        %v418 = vld [vmem:[%s359 + $0x28] sm:$0xff]
        %v419 = vld [vmem:[%s359 + $0x30] sm:$0xff]
        %v420 = vld [vmem:[%s359 + $0x38] sm:$0xff]
        %v421 = vpack.c.bf16 %v415, %v413
        %v422 = vpack.c.bf16 %v416, %v414
        %v423 = vpack.c.bf16 %v419, %v417
        %v424 = vpack.c.bf16 %v420, %v418
        %v425 = vld [vmem:[#allocation5] sm:$0xf]
        %v426 = vld [vmem:[#allocation5 + $0x4] sm:$0xf]
        %v427 = vld [vmem:[#allocation5 + $0x8] sm:$0xf]
        %v428 = vld [vmem:[#allocation5 + $0xc] sm:$0xf]
        %v429 = vld [vmem:[#allocation5 + $0x10] sm:$0xf]
        %v430 = vld [vmem:[#allocation5 + $0x14] sm:$0xf]
        %v431 = vld [vmem:[#allocation5 + $0x18] sm:$0xf]
        %v432 = vld [vmem:[#allocation5 + $0x1c] sm:$0xf]
        %v433 = vld [vmem:[#allocation5 + $0x20] sm:$0xf]
        %v434 = vld [vmem:[#allocation5 + $0x24] sm:$0xf]
        %v435 = vld [vmem:[#allocation5 + $0x28] sm:$0xf]
        %v436 = vld [vmem:[#allocation5 + $0x2c] sm:$0xf]
        %v437 = vld [vmem:[#allocation5 + $0x30] sm:$0xf]
        %v438 = vld [vmem:[#allocation5 + $0x34] sm:$0xf]
        %v439 = vld [vmem:[#allocation5 + $0x38] sm:$0xf]
        %v440 = vld [vmem:[#allocation5 + $0x3c] sm:$0xf]
        %v441 = vld [vmem:[#allocation5 + $0x40] sm:$0xf]
        %v442 = vld [vmem:[#allocation5 + $0x44] sm:$0xf]
        %v443 = vld [vmem:[#allocation5 + $0x48] sm:$0xf]
        %v444 = vld [vmem:[#allocation5 + $0x4c] sm:$0xf]
        %v445 = vld [vmem:[#allocation5 + $0x50] sm:$0xf]
        %v446 = vld [vmem:[#allocation5 + $0x54] sm:$0xf]
        %v447 = vld [vmem:[#allocation5 + $0x58] sm:$0xf]
        %v448 = vld [vmem:[#allocation5 + $0x5c] sm:$0xf]
        %v449 = vld [vmem:[#allocation5 + $0x60] sm:$0xf]
        %v450 = vld [vmem:[#allocation5 + $0x64] sm:$0xf]
        %v451 = vld [vmem:[#allocation5 + $0x68] sm:$0xf]
        %v452 = vld [vmem:[#allocation5 + $0x6c] sm:$0xf]
        %v453 = vld [vmem:[#allocation5 + $0x70] sm:$0xf]
        %v454 = vld [vmem:[#allocation5 + $0x74] sm:$0xf]
        %v455 = vld [vmem:[#allocation5 + $0x78] sm:$0xf]
        %v456 = vld [vmem:[#allocation5 + $0x7c] sm:$0xf]
        %v457 = vld [vmem:[%s2] sm:$0x1]
        %v459 = vlaneseq
        %v460 = vshrl.u32 %v459, 7
        %v461 = vsub.s32 0, %v460
        %v462 = vrot.slane %v457, %v461
        %v496 = vunpack.c.l.b16 %v425
        %v497 = vunpack.c.l.b16 %v426
        %v498 = vunpack.c.l.b16 %v427
        %v499 = vunpack.c.l.b16 %v428
        %v500 = vunpack.c.l.b16 %v429
        %v501 = vunpack.c.l.b16 %v430
        %v502 = vunpack.c.l.b16 %v431
        %v503 = vunpack.c.l.b16 %v432
        %v504 = vunpack.c.l.b16 %v433
        %v505 = vunpack.c.l.b16 %v434
        %v506 = vunpack.c.l.b16 %v435
        %v507 = vunpack.c.l.b16 %v436
        %v508 = vunpack.c.l.b16 %v437
        %v509 = vunpack.c.l.b16 %v438
        %v510 = vunpack.c.l.b16 %v439
        %v511 = vunpack.c.l.b16 %v440
        %v512 = vunpack.c.l.b16 %v441
        %v513 = vunpack.c.l.b16 %v442
        %v514 = vunpack.c.l.b16 %v443
        %v515 = vunpack.c.l.b16 %v444
        %v516 = vunpack.c.l.b16 %v445
        %v517 = vunpack.c.l.b16 %v446
        %v518 = vunpack.c.l.b16 %v447
        %v519 = vunpack.c.l.b16 %v448
        %v520 = vunpack.c.l.b16 %v449
        %v521 = vunpack.c.l.b16 %v450
        %v522 = vunpack.c.l.b16 %v451
        %v523 = vunpack.c.l.b16 %v452
        %v524 = vunpack.c.l.b16 %v453
        %v525 = vunpack.c.l.b16 %v454
        %v526 = vunpack.c.l.b16 %v455
        %v527 = vunpack.c.l.b16 %v456
        %v528 = vpack.c.b16 %v497, %v496
        %v529 = vpack.c.b16 %v499, %v498
        %v530 = vpack.c.b16 %v501, %v500
        %v531 = vpack.c.b16 %v503, %v502
        %v532 = vpack.c.b16 %v505, %v504
        %v533 = vpack.c.b16 %v507, %v506
        %v534 = vpack.c.b16 %v509, %v508
        %v535 = vpack.c.b16 %v511, %v510
        %v536 = vpack.c.b16 %v513, %v512
        %v537 = vpack.c.b16 %v515, %v514
        %v538 = vpack.c.b16 %v517, %v516
        %v539 = vpack.c.b16 %v519, %v518
        %v540 = vpack.c.b16 %v521, %v520
        %v541 = vpack.c.b16 %v523, %v522
        %v542 = vpack.c.b16 %v525, %v524
        %v543 = vpack.c.b16 %v527, %v526
        %560 = vmatprep.subr.bf16.mxu0 0
        %561 = vmatpush1.bf16.msra.mxu0 %v528
        %562 = vmatprep.subr.bf16.mxu0 0
        %563 = vmatpush1.bf16.msra.mxu0 %v529
        %564 = vmatprep.subr.bf16.mxu0 0
        %565 = vmatpush1.bf16.msra.mxu0 %v530
        %566 = vmatprep.subr.bf16.mxu0 0
        %567 = vmatpush1.bf16.msra.mxu0 %v531
        %568 = vmatprep.subr.bf16.mxu0 0
        %569 = vmatpush1.bf16.msra.mxu0 %v532
        %570 = vmatprep.subr.bf16.mxu0 0
        %571 = vmatpush1.bf16.msra.mxu0 %v533
        %572 = vmatprep.subr.bf16.mxu0 0
        %573 = vmatpush1.bf16.msra.mxu0 %v534
        %574 = vmatprep.subr.bf16.mxu0 0
        %575 = vmatpush1.bf16.msra.mxu0 %v535
        %576 = vmatprep.subr.bf16.mxu0 0
        %577 = vmatpush1.bf16.msra.mxu0 %v536
        %578 = vmatprep.subr.bf16.mxu0 0
        %579 = vmatpush1.bf16.msra.mxu0 %v537
        %580 = vmatprep.subr.bf16.mxu0 0
        %581 = vmatpush1.bf16.msra.mxu0 %v538
        %582 = vmatprep.subr.bf16.mxu0 0
        %583 = vmatpush1.bf16.msra.mxu0 %v539
        %584 = vmatprep.subr.bf16.mxu0 0
        %585 = vmatpush1.bf16.msra.mxu0 %v540
        %586 = vmatprep.subr.bf16.mxu0 0
        %587 = vmatpush1.bf16.msra.mxu0 %v541
        %588 = vmatprep.subr.bf16.mxu0 0
        %589 = vmatpush1.bf16.msra.mxu0 %v542
        %590 = vmatprep.subr.bf16.mxu0 0
        %591 = vmatpush1.bf16.msra.mxu0 %v543
        %592 = vmatprep.mubr.bf16.mxu0 %v422
        %593 = vmatmul.mubr.bf16.gmra.mrb[0].mxu0 %v421
        %v594 = vpop.f32.mrb[0].mxu0
        %v595 = vadd.f32 %v462, %v594
        %v596 = vpop.f32.mrb[0].mxu0
        %v597 = vpop.f32.mrb[0].mxu0
        %v598 = vadd.f32 %v462, %v597
        %v599 = vpop.f32.mrb[0].mxu0
        %600 = vmatprep.mubr.bf16.mxu0 %v424
        %601 = vmatmul.mubr.bf16.gmra.mrb[0].mxu0 %v423
        %v602 = vpop.f32.mrb[0].mxu0
        %v603 = vadd.f32 %v462, %v602
        %v604 = vpop.f32.mrb[0].mxu0
        %v605 = vpop.f32.mrb[0].mxu0
        %v606 = vadd.f32 %v462, %v605
        %v607 = vpop.f32.mrb[0].mxu0
        %608 = vdwg.mxu0
        %v609 = vmax.f32 %v595, 0.0
        %v610 = vmax.f32 %v598, 0.0
        %v611 = vmax.f32 %v603, 0.0
        %v612 = vmax.f32 %v606, 0.0
        %v613 = vpack.c.bf16 %v610, %v609
        %v614 = vpack.c.bf16 %v612, %v611
        %v615 = vld [vmem:[#allocation7] sm:$0xf]
        %v616 = vld [vmem:[#allocation7 + $0x4] sm:$0xf]
        %v617 = vld [vmem:[#allocation7 + $0x8] sm:$0xf]
        %v618 = vld [vmem:[#allocation7 + $0xc] sm:$0xf]
        %v619 = vld [vmem:[#allocation7 + $0x10] sm:$0xf]
        %v620 = vld [vmem:[#allocation7 + $0x14] sm:$0xf]
        %v621 = vld [vmem:[#allocation7 + $0x18] sm:$0xf]
        %v622 = vld [vmem:[#allocation7 + $0x1c] sm:$0xf]
        %v623 = vld [vmem:[#allocation7 + $0x20] sm:$0xf]
        %v624 = vld [vmem:[#allocation7 + $0x24] sm:$0xf]
        %v625 = vld [vmem:[#allocation7 + $0x28] sm:$0xf]
        %v626 = vld [vmem:[#allocation7 + $0x2c] sm:$0xf]
        %v627 = vld [vmem:[#allocation7 + $0x30] sm:$0xf]
        %v628 = vld [vmem:[#allocation7 + $0x34] sm:$0xf]
        %v629 = vld [vmem:[#allocation7 + $0x38] sm:$0xf]
        %v630 = vld [vmem:[#allocation7 + $0x3c] sm:$0xf]
        %v631 = vld [vmem:[%s4] sm:$0x1]
        %v633 = vlaneseq
        %v634 = vshrl.u32 %v633, 7
        %v635 = vsub.s32 0, %v634
        %v636 = vrot.slane %v631, %v635
        %v654 = vunpack.c.l.b16 %v615
        %v655 = vunpack.c.l.b16 %v616
        %v656 = vunpack.c.l.b16 %v617
        %v657 = vunpack.c.l.b16 %v618
        %v658 = vunpack.c.l.b16 %v619
        %v659 = vunpack.c.l.b16 %v620
        %v660 = vunpack.c.l.b16 %v621
        %v661 = vunpack.c.l.b16 %v622
        %v662 = vunpack.c.l.b16 %v623
        %v663 = vunpack.c.l.b16 %v624
        %v664 = vunpack.c.l.b16 %v625
        %v665 = vunpack.c.l.b16 %v626
        %v666 = vunpack.c.l.b16 %v627
        %v667 = vunpack.c.l.b16 %v628
        %v668 = vunpack.c.l.b16 %v629
        %v669 = vunpack.c.l.b16 %v630
        %v670 = vpack.c.b16 %v655, %v654
        %v671 = vpack.c.b16 %v657, %v656
        %v672 = vpack.c.b16 %v659, %v658
        %v673 = vpack.c.b16 %v661, %v660
        %v674 = vpack.c.b16 %v663, %v662
        %v675 = vpack.c.b16 %v665, %v664
        %v676 = vpack.c.b16 %v667, %v666
        %v677 = vpack.c.b16 %v669, %v668
        %686 = vmatprep.subr.bf16.mxu0 0
        %687 = vmatpush1.bf16.msra.mxu0 %v670
        %688 = vmatprep.subr.bf16.mxu0 0
        %689 = vmatpush1.bf16.msra.mxu0 %v671
        %690 = vmatprep.subr.bf16.mxu0 0
        %691 = vmatpush1.bf16.msra.mxu0 %v672
        %692 = vmatprep.subr.bf16.mxu0 0
        %693 = vmatpush1.bf16.msra.mxu0 %v673
        %694 = vmatprep.subr.bf16.mxu0 0
        %695 = vmatpush1.bf16.msra.mxu0 %v674
        %696 = vmatprep.subr.bf16.mxu0 0
        %697 = vmatpush1.bf16.msra.mxu0 %v675
        %698 = vmatprep.subr.bf16.mxu0 0
        %699 = vmatpush1.bf16.msra.mxu0 %v676
        %700 = vmatprep.subr.bf16.mxu0 0
        %701 = vmatpush1.bf16.msra.mxu0 %v677
        %702 = vmatprep.subr.bf16.mxu0 0
        %703 = vmatpush1.bf16.msra.mxu0 0
        %704 = vmatprep.subr.bf16.mxu0 0
        %705 = vmatpush1.bf16.msra.mxu0 0
        %706 = vmatprep.subr.bf16.mxu0 0
        %707 = vmatpush1.bf16.msra.mxu0 0
        %708 = vmatprep.subr.bf16.mxu0 0
        %709 = vmatpush1.bf16.msra.mxu0 0
        %710 = vmatprep.subr.bf16.mxu0 0
        %711 = vmatpush1.bf16.msra.mxu0 0
        %712 = vmatprep.subr.bf16.mxu0 0
        %713 = vmatpush1.bf16.msra.mxu0 0
        %714 = vmatprep.subr.bf16.mxu0 0
        %715 = vmatpush1.bf16.msra.mxu0 0
        %716 = vmatprep.subr.bf16.mxu0 0
        %717 = vmatpush1.bf16.msra.mxu0 0
        %718 = vmatprep.mubr.bf16.mxu0 0
        %719 = vmatmul.mubr.bf16.gmra.mrb[0].mxu0 %v613
        %v720 = vpop.f32.mrb[0].mxu0
        %v721 = vadd.f32 %v636, %v720
        %v722 = vpop.f32.mrb[0].mxu0
        %v723 = vpop.f32.mrb[0].mxu0
        %v724 = vadd.f32 %v636, %v723
        %v725 = vpop.f32.mrb[0].mxu0
        %726 = vmatprep.mubr.bf16.mxu0 0
        %727 = vmatmul.mubr.bf16.gmra.mrb[0].mxu0 %v614
        %v728 = vpop.f32.mrb[0].mxu0
        %v729 = vadd.f32 %v636, %v728
        %v730 = vpop.f32.mrb[0].mxu0
        %v731 = vpop.f32.mrb[0].mxu0
        %v732 = vadd.f32 %v636, %v731
        %v733 = vpop.f32.mrb[0].mxu0
        %734 = vdwg.mxu0
        %v735 = vpack.c.bf16 %v724, %v721
        %v736 = vpack.c.bf16 %v732, %v729
        %v737 = vld [vmem:[#allocation8] sm:$0xf]
        %v738 = vld [vmem:[#allocation8 + $0x4] sm:$0xf]
        %v739 = vld [vmem:[#allocation8 + $0x8] sm:$0xf]
        %v740 = vld [vmem:[#allocation8 + $0xc] sm:$0xf]
        %v741 = vld [vmem:[#allocation8 + $0x10] sm:$0xf]
        %v742 = vld [vmem:[#allocation8 + $0x14] sm:$0xf]
        %v743 = vld [vmem:[#allocation8 + $0x18] sm:$0xf]
        %v744 = vld [vmem:[#allocation8 + $0x1c] sm:$0xf]
        %v745 = vld [vmem:[#allocation8 + $0x20] sm:$0xf]
        %v746 = vld [vmem:[#allocation8 + $0x24] sm:$0xf]
        %v747 = vld [vmem:[#allocation8 + $0x28] sm:$0xf]
        %v748 = vld [vmem:[#allocation8 + $0x2c] sm:$0xf]
        %v749 = vld [vmem:[#allocation8 + $0x30] sm:$0xf]
        %v750 = vld [vmem:[#allocation8 + $0x34] sm:$0xf]
        %v751 = vld [vmem:[#allocation8 + $0x38] sm:$0xf]
        %v752 = vld [vmem:[#allocation8 + $0x3c] sm:$0xf]
        %v753 = vld [vmem:[%s6] sm:$0x1]
        %v755 = vlaneseq
        %v756 = vshrl.u32 %v755, 7
        %v757 = vsub.s32 0, %v756
        %v758 = vrot.slane %v753, %v757
        %v776 = vunpack.c.l.b16 %v737
        %v777 = vunpack.c.l.b16 %v738
        %v778 = vunpack.c.l.b16 %v739
        %v779 = vunpack.c.l.b16 %v740
        %v780 = vunpack.c.l.b16 %v741
        %v781 = vunpack.c.l.b16 %v742
        %v782 = vunpack.c.l.b16 %v743
        %v783 = vunpack.c.l.b16 %v744
        %v784 = vunpack.c.l.b16 %v745
        %v785 = vunpack.c.l.b16 %v746
        %v786 = vunpack.c.l.b16 %v747
        %v787 = vunpack.c.l.b16 %v748
        %v788 = vunpack.c.l.b16 %v749
        %v789 = vunpack.c.l.b16 %v750
        %v790 = vunpack.c.l.b16 %v751
        %v791 = vunpack.c.l.b16 %v752
        %v792 = vpack.c.b16 %v777, %v776
        %v793 = vpack.c.b16 %v779, %v778
        %v794 = vpack.c.b16 %v781, %v780
        %v795 = vpack.c.b16 %v783, %v782
        %v796 = vpack.c.b16 %v785, %v784
        %v797 = vpack.c.b16 %v787, %v786
        %v798 = vpack.c.b16 %v789, %v788
        %v799 = vpack.c.b16 %v791, %v790
        %808 = vmatprep.subr.bf16.mxu0 0
        %809 = vmatpush1.bf16.msra.mxu0 %v792
        %810 = vmatprep.subr.bf16.mxu0 0
        %811 = vmatpush1.bf16.msra.mxu0 %v793
        %812 = vmatprep.subr.bf16.mxu0 0
        %813 = vmatpush1.bf16.msra.mxu0 %v794
        %814 = vmatprep.subr.bf16.mxu0 0
        %815 = vmatpush1.bf16.msra.mxu0 %v795
        %816 = vmatprep.subr.bf16.mxu0 0
        %817 = vmatpush1.bf16.msra.mxu0 %v796
        %818 = vmatprep.subr.bf16.mxu0 0
        %819 = vmatpush1.bf16.msra.mxu0 %v797
        %820 = vmatprep.subr.bf16.mxu0 0
        %821 = vmatpush1.bf16.msra.mxu0 %v798
        %822 = vmatprep.subr.bf16.mxu0 0
        %823 = vmatpush1.bf16.msra.mxu0 %v799
        %824 = vmatprep.subr.bf16.mxu0 0
        %825 = vmatpush1.bf16.msra.mxu0 0
        %826 = vmatprep.subr.bf16.mxu0 0
        %827 = vmatpush1.bf16.msra.mxu0 0
        %828 = vmatprep.subr.bf16.mxu0 0
        %829 = vmatpush1.bf16.msra.mxu0 0
        %830 = vmatprep.subr.bf16.mxu0 0
        %831 = vmatpush1.bf16.msra.mxu0 0
        %832 = vmatprep.subr.bf16.mxu0 0
        %833 = vmatpush1.bf16.msra.mxu0 0
        %834 = vmatprep.subr.bf16.mxu0 0
        %835 = vmatpush1.bf16.msra.mxu0 0
        %836 = vmatprep.subr.bf16.mxu0 0
        %837 = vmatpush1.bf16.msra.mxu0 0
        %838 = vmatprep.subr.bf16.mxu0 0
        %839 = vmatpush1.bf16.msra.mxu0 0
        %840 = vmatprep.mubr.bf16.mxu0 0
        %841 = vmatmul.mubr.bf16.gmra.mrb[0].mxu0 %v735
        %v842 = vpop.f32.mrb[0].mxu0
        %v843 = vadd.f32 %v758, %v842
        %v844 = vpop.f32.mrb[0].mxu0
        %v845 = vpop.f32.mrb[0].mxu0
        %v846 = vadd.f32 %v758, %v845
        %v847 = vpop.f32.mrb[0].mxu0
        %848 = vmatprep.mubr.bf16.mxu0 0
        %849 = vmatmul.mubr.bf16.gmra.mrb[0].mxu0 %v736
        %v850 = vpop.f32.mrb[0].mxu0
        %v851 = vadd.f32 %v758, %v850
        %v852 = vpop.f32.mrb[0].mxu0
        %v853 = vpop.f32.mrb[0].mxu0
        %v854 = vadd.f32 %v758, %v853
        %v855 = vpop.f32.mrb[0].mxu0
        %856 = vdwg.mxu0
        %v857 = vmax.f32 %v843, 0.0
        %v858 = vmax.f32 %v846, 0.0
        %v859 = vmax.f32 %v851, 0.0
        %v860 = vmax.f32 %v854, 0.0
        %v861 = vpack.c.bf16 %v858, %v857
        %v862 = vpack.c.bf16 %v860, %v859
        %v863 = vld [vmem:[#allocation10] sm:$0xff]
        %v864 = vld [vmem:[#allocation10 + $0x8] sm:$0xff]
        %v865 = vld [vmem:[#allocation10 + $0x10] sm:$0xff]
        %v866 = vld [vmem:[#allocation10 + $0x18] sm:$0xff]
        %v867 = vld [vmem:[#allocation10 + $0x20] sm:$0xff]
        %v868 = vld [vmem:[#allocation10 + $0x28] sm:$0xff]
        %v869 = vld [vmem:[#allocation10 + $0x30] sm:$0xff]
        %v870 = vld [vmem:[#allocation10 + $0x38] sm:$0xff]
        %v871 = vld [vmem:[#allocation10 + $0x40] sm:$0xff]
        %v872 = vld [vmem:[#allocation10 + $0x48] sm:$0xff]
        %v873 = vld [vmem:[#allocation10 + $0x50] sm:$0xff]
        %v874 = vld [vmem:[#allocation10 + $0x58] sm:$0xff]
        %v875 = vld [vmem:[#allocation10 + $0x60] sm:$0xff]
        %v876 = vld [vmem:[#allocation10 + $0x68] sm:$0xff]
        %v877 = vld [vmem:[#allocation10 + $0x70] sm:$0xff]
        %v878 = vld [vmem:[#allocation10 + $0x78] sm:$0xff]
        %v879 = vld [vmem:[%s8] sm:$0x3]
        %v881 = vlaneseq
        %v882 = vshrl.u32 %v881, 7
        %v883 = vsub.s32 0, %v882
        %v884 = vrot.slane %v879, %v883
        %v885 = vlaneseq
        %v886 = vshrl.u32 %v885, 7
        %v887 = vsub.s32 1, %v886
        %v888 = vrot.slane %v879, %v887
        %v907 = vunpack.c.l.b16 %v863
        %v908 = vunpack.c.h.b16 %v863
        %v909 = vunpack.c.l.b16 %v864
        %v910 = vunpack.c.h.b16 %v864
        %v911 = vunpack.c.l.b16 %v865
        %v912 = vunpack.c.h.b16 %v865
        %v913 = vunpack.c.l.b16 %v866
        %v914 = vunpack.c.h.b16 %v866
        %v915 = vunpack.c.l.b16 %v867
        %v916 = vunpack.c.h.b16 %v867
        %v917 = vunpack.c.l.b16 %v868
        %v918 = vunpack.c.h.b16 %v868
        %v919 = vunpack.c.l.b16 %v869
        %v920 = vunpack.c.h.b16 %v869
        %v921 = vunpack.c.l.b16 %v870
        %v922 = vunpack.c.h.b16 %v870
        %v923 = vunpack.c.l.b16 %v871
        %v924 = vunpack.c.h.b16 %v871
        %v925 = vunpack.c.l.b16 %v872
        %v926 = vunpack.c.h.b16 %v872
        %v927 = vunpack.c.l.b16 %v873
        %v928 = vunpack.c.h.b16 %v873
        %v929 = vunpack.c.l.b16 %v874
        %v930 = vunpack.c.h.b16 %v874
        %v931 = vunpack.c.l.b16 %v875
        %v932 = vunpack.c.h.b16 %v875
        %v933 = vunpack.c.l.b16 %v876
        %v934 = vunpack.c.h.b16 %v876
        %v935 = vunpack.c.l.b16 %v877
        %v936 = vunpack.c.h.b16 %v877
        %v937 = vunpack.c.l.b16 %v878
        %v938 = vunpack.c.h.b16 %v878
        %v939 = vpack.c.b16 %v909, %v907
        %v940 = vpack.c.b16 %v910, %v908
        %v941 = vpack.c.b16 %v913, %v911
        %v942 = vpack.c.b16 %v914, %v912
        %v943 = vpack.c.b16 %v917, %v915
        %v944 = vpack.c.b16 %v918, %v916
        %v945 = vpack.c.b16 %v921, %v919
        %v946 = vpack.c.b16 %v922, %v920
        %v947 = vpack.c.b16 %v925, %v923
        %v948 = vpack.c.b16 %v926, %v924
        %v949 = vpack.c.b16 %v929, %v927
        %v950 = vpack.c.b16 %v930, %v928
        %v951 = vpack.c.b16 %v933, %v931
        %v952 = vpack.c.b16 %v934, %v932
        %v953 = vpack.c.b16 %v937, %v935
        %v954 = vpack.c.b16 %v938, %v936
        %971 = vmatprep.subr.bf16.mxu0 %v940
        %972 = vmatpush1.bf16.msra.mxu0 %v939
        %973 = vmatprep.subr.bf16.mxu0 %v942
        %974 = vmatpush1.bf16.msra.mxu0 %v941
        %975 = vmatprep.subr.bf16.mxu0 %v944
        %976 = vmatpush1.bf16.msra.mxu0 %v943
        %977 = vmatprep.subr.bf16.mxu0 %v946
        %978 = vmatpush1.bf16.msra.mxu0 %v945
        %979 = vmatprep.subr.bf16.mxu0 %v948
        %980 = vmatpush1.bf16.msra.mxu0 %v947
        %981 = vmatprep.subr.bf16.mxu0 %v950
        %982 = vmatpush1.bf16.msra.mxu0 %v949
        %983 = vmatprep.subr.bf16.mxu0 %v952
        %984 = vmatpush1.bf16.msra.mxu0 %v951
        %985 = vmatprep.subr.bf16.mxu0 %v954
        %986 = vmatpush1.bf16.msra.mxu0 %v953
        %987 = vmatprep.subr.bf16.mxu0 0
        %988 = vmatpush1.bf16.msra.mxu0 0
        %989 = vmatprep.subr.bf16.mxu0 0
        %990 = vmatpush1.bf16.msra.mxu0 0
        %991 = vmatprep.subr.bf16.mxu0 0
        %992 = vmatpush1.bf16.msra.mxu0 0
        %993 = vmatprep.subr.bf16.mxu0 0
        %994 = vmatpush1.bf16.msra.mxu0 0
        %995 = vmatprep.subr.bf16.mxu0 0
        %996 = vmatpush1.bf16.msra.mxu0 0
        %997 = vmatprep.subr.bf16.mxu0 0
        %998 = vmatpush1.bf16.msra.mxu0 0
        %999 = vmatprep.subr.bf16.mxu0 0
        %1000 = vmatpush1.bf16.msra.mxu0 0
        %1001 = vmatprep.subr.bf16.mxu0 0
        %1002 = vmatpush1.bf16.msra.mxu0 0
        %1003 = vmatprep.mubr.bf16.mxu0 0
        %1004 = vmatmul.mubr.bf16.gmra.mrb[0].mxu0 %v861
        %v1005 = vpop.f32.mrb[0].mxu0
        %v1006 = vadd.f32 %v884, %v1005
        %v1007 = vpop.f32.mrb[0].mxu0
        %v1008 = vadd.f32 %v888, %v1007
        %v1009 = vpop.f32.mrb[0].mxu0
        %v1010 = vadd.f32 %v884, %v1009
        %v1011 = vpop.f32.mrb[0].mxu0
        %v1012 = vadd.f32 %v888, %v1011
        %1013 = vmatprep.mubr.bf16.mxu0 0
        %1014 = vmatmul.mubr.bf16.gmra.mrb[0].mxu0 %v862
        %v1015 = vpop.f32.mrb[0].mxu0
        %v1016 = vadd.f32 %v884, %v1015
        %v1017 = vpop.f32.mrb[0].mxu0
        %v1018 = vadd.f32 %v888, %v1017
        %v1019 = vpop.f32.mrb[0].mxu0
        %v1020 = vadd.f32 %v884, %v1019
        %v1021 = vpop.f32.mrb[0].mxu0
        %v1022 = vadd.f32 %v888, %v1021
        %1023 = vdwg.mxu0
        %v1024 = vmul.f32 %v1006, 0.5
        %v1025 = vmul.f32 %v1008, 0.5
        %v1026 = vmul.f32 %v1010, 0.5
        %v1027 = vmul.f32 %v1012, 0.5
        %v1028 = vmul.f32 %v1016, 0.5
        %v1029 = vmul.f32 %v1018, 0.5
        %v1030 = vmul.f32 %v1020, 0.5
        %v1031 = vmul.f32 %v1022, 0.5
        %v1032 = vtanh.pop %v1024
        %v1033 = vtanh.pop %v1025
        %v1034 = vtanh.pop %v1026
        %v1035 = vtanh.pop %v1027
        %v1036 = vtanh.pop %v1028
        %v1037 = vtanh.pop %v1029
        %v1038 = vtanh.pop %v1030
        %v1039 = vtanh.pop %v1031
        %v1040 = vmul.f32 %v1032, 0.5
        %v1041 = vmul.f32 %v1033, 0.5
        %v1042 = vmul.f32 %v1034, 0.5
        %v1043 = vmul.f32 %v1035, 0.5
        %v1044 = vmul.f32 %v1036, 0.5
        %v1045 = vmul.f32 %v1037, 0.5
        %v1046 = vmul.f32 %v1038, 0.5
        %v1047 = vmul.f32 %v1039, 0.5
        %v1048 = vadd.f32 %v1040, 0.5
        %v1049 = vadd.f32 %v1041, 0.5
        %v1050 = vadd.f32 %v1042, 0.5
        %v1051 = vadd.f32 %v1043, 0.5
        %v1052 = vadd.f32 %v1044, 0.5
        %v1053 = vadd.f32 %v1045, 0.5
        %v1054 = vadd.f32 %v1046, 0.5
        %v1055 = vadd.f32 %v1047, 0.5
        %1056 = vst [vmem:[%s409] sm:$0xff] %v1048
        %1057 = vst [vmem:[%s409 + $0x8] sm:$0xff] %v1049
        %1058 = vst [vmem:[%s409 + $0x10] sm:$0xff] %v1050
        %1059 = vst [vmem:[%s409 + $0x18] sm:$0xff] %v1051
        %1060 = vst [vmem:[%s409 + $0x20] sm:$0xff] %v1052
        %1061 = vst [vmem:[%s409 + $0x28] sm:$0xff] %v1053
        %1062 = vst [vmem:[%s409 + $0x30] sm:$0xff] %v1054
        %1063 = vst [vmem:[%s409 + $0x38] sm:$0xff] %v1055
        %s1064 = sand.u32 %s230, 1
        %s1065 = scalar_lea.sflag [#allocation4], %s1064
        %s1066 = sand.u32 %s230, 1
        %s1067 = smul.addr %s1066, 64
        %s1068 = scalar_lea.vmem [#allocation11], %s1067
        // Predicated region
        $region77: #{tpu_custom_call.1} parent=55 // pred_check
          %p1069 = pneg %p240
        $region78: #{tpu_custom_call.1} parent=55 // pred_check_branch
          %1071 = sbr.rel (%p1069) target = $region80
        $region79: #{tpu_custom_call.1} parent=55 // pred_region
          %s1072 = smul.u32 4, %s28
          %s1074 = ssub.s32 1024, 1024
          %1075 = vsyncadd %s1065, %s1074
          %s1076 = smul.addr %s1072, 2
          %s1077 = smul.addr %s1076, 128
          %s1078 = scalar_lea.hbm %s9, %s1077
          %s1079 = sshll.u32 %s1068, 4
          %s1080 = int_to_ptr.vmem [resolvable:$true] %s1079
          %1085 = dma.vmem_to_hbm [thread:$0]  %s1080, 1024, %s1078, %s1065, 256, 256, 16
        $region80: #{tpu_custom_call.1} parent=55 // pred_fallthru
          _
      $region56: #{tpu_custom_call.1} parent=5 // pred_fallthru
        _
      %p1086 = scmp.le.s32.totalorder 2, %s23
      // Predicated region
      $region81: #{tpu_custom_call.1} parent=5 // pred_check
        %p1087 = pneg %p1086
      $region82: #{tpu_custom_call.1} parent=5 // pred_check_branch
        %1089 = sbr.rel (%p1087) target = $region84
      $region83: #{tpu_custom_call.1} parent=5 // pred_region
        %s1090 = ssub.s32 %s23, 2
        // Predicated region
        $region85: #{tpu_custom_call.1} parent=83 // pred_check
          %p1091 = pneg %p246
        $region86: #{tpu_custom_call.1} parent=83 // pred_check_branch
          %1093 = sbr.rel (%p1091) target = $region88
        $region87: #{tpu_custom_call.1} parent=83 // pred_region
          %s1094 = sand.u32 %s231, 1
          %s1095 = scalar_lea.sflag [#allocation4], %s1094
          %s1096 = sand.u32 %s231, 1
          %s1097 = smul.addr %s1096, 64
          %s1098 = scalar_lea.vmem [#allocation11], %s1097
          %1099 = dma.done %s1095, 1024
        $region88: #{tpu_custom_call.1} parent=83 // pred_fallthru
          _
      $region84: #{tpu_custom_call.1} parent=5 // pred_fallthru
        _
    $region6: #{tpu_custom_call.1} parent=1 // loop_footer
      %s27 = sadd.s32 1, %s23
    $region7: #{tpu_custom_call.1} parent=1 // loop_footer_branch
      %22 = sbr.rel target = $region3
    $region8: #{tpu_custom_call.1} parent=1 // loop_exit
      _
    %1100 = vsyncpa [#allocation3], 1
    %s1101 = scalar_lea.sflag [#allocation3], 1
    %1102 = vsyncpa %s1101, 1
    %1103 = vsyncpa [#allocation6], 1
    %1104 = vsyncpa [#allocation9], 1
    %1105 = vsyncpa [#allocation4], 1
    %s1106 = scalar_lea.sflag [#allocation4], 1
    %1107 = vsyncpa %s1106, 1

</llo_original>
